<compile_context>
chip_gen: v6e
topology: v6e:2x2x1
jax: 0.10.0
libtpu: 0.0.40
codegen_flags: <defaults>
</compile_context>

<pallas_src>
import functools

import jax
import jax.numpy as jnp
from jax import lax
from jax.experimental import pallas as pl
from jax.experimental.pallas import tpu as pltpu


def _make_combiner_kernel(n_layers: int):
    """Build a fused weighted-sum kernel over `n_layers` VMEM tiles.

    Kernel args:
      theta_ref : SMEM f32[n_layers]            (architecture coefficients)
      x_ref_0..x_ref_{n-1} : VMEM [tr, lw]      (layer i output tile, HBM dtype)
      o_ref     : VMEM [tr, lw]                 (output tile, output dtype)
    """

    def kernel(theta_ref, *refs):
        x_refs = refs[:n_layers]
        o_ref = refs[n_layers]
        acc = theta_ref[0] * x_refs[0][...].astype(jnp.float32)
        for i in range(1, n_layers):
            acc = acc + theta_ref[i] * x_refs[i][...].astype(jnp.float32)
        o_ref[...] = acc.astype(o_ref.dtype)

    return kernel


def sample_alpha_sm(alpha: jax.Array, softmax_temperature: float = 1.0,
                    hard_softmax: bool = False) -> jax.Array:
    """theta_alpha update (PITSuperNetCombiner.sample_alpha_sm)."""
    theta = jax.nn.softmax(alpha / softmax_temperature, axis=0)
    if hard_softmax:
        theta = jax.nn.one_hot(jnp.argmax(theta, axis=0), alpha.shape[0],
                               dtype=jnp.float32)
    return theta
    # TODO(synk): gumbel_softmax training-mode sampling (stochastic) not
    # implemented; eval mode of sample_alpha_gs falls back to this softmax path.


def _choose_layout(total: int):
    """Pick a lane-dense 2D layout (rows, lane_w) for `total` elements.

    Prefers a wide last dim (long contiguous DMA rows, unmasked vst) while
    keeping rows >= 8 when possible. Padding is only used when no lane width
    divides the element count.
    """
    for lw in (1024, 512, 256, 128):
        if total % lw == 0 and total // lw >= 8:
            return lw, total // lw, total
    for lw in (1024, 512, 256, 128):
        if total % lw == 0:
            return lw, total // lw, total
    lw = 128
    padded = ((total + lw - 1) // lw) * lw
    return lw, padded // lw, padded


@functools.partial(jax.jit, static_argnames=("softmax_temperature", "hard_softmax"))
def pit_supernet_combiner_forward(layers_outputs, alpha,
                                  softmax_temperature: float = 1.0,
                                  hard_softmax: bool = False):
    """Weighted sum of alternative-layer outputs (the forward() hot path)."""
    n_layers = len(layers_outputs)
    assert alpha.shape == (n_layers,)
    out_shape = layers_outputs[0].shape
    out_dtype = layers_outputs[0].dtype

    # Architectural coefficients (tiny vector): plain-JAX glue.
    theta = sample_alpha_sm(alpha.astype(jnp.float32), softmax_temperature,
                            hard_softmax)

    if hard_softmax:
        # theta is one-hot: the weighted sum reduces to selecting one branch.
        # Avoid reading the other n_layers-1 feature maps from HBM entirely.
        idx = jnp.argmax(theta, axis=0)
        y = lax.switch(idx, [lambda o=o: o for o in layers_outputs])
        return y, theta

    total = 1
    for d in out_shape:
        total *= d
    lane_w, rows, padded = _choose_layout(total)

    def to_slab(x):
        f = x.reshape(total)
        if padded != total:
            f = jnp.pad(f, (0, padded - total))
        return f.reshape(rows, lane_w)

    slabs = [to_slab(x) for x in layers_outputs]  # keep HBM dtype; no stack

    # Row-tile sizing: ~512 KiB (f32) per input tile, rows a multiple of 8.
    # VMEM budget ~= (n_layers + 1) * 2 buffers * tile_bytes, well under the
    # default scoped limit on v5e/v6e/v7x.
    target_rows = max(8, ((131072 // lane_w) // 8) * 8)
    tile_rows = min(rows, target_rows)
    if tile_rows < rows:
        tile_rows = max(8, (tile_rows // 8) * 8)
    num_tiles = pl.cdiv(rows, tile_rows)

    kernel = _make_combiner_kernel(n_layers)
    block_spec = pl.BlockSpec((tile_rows, lane_w), lambda i: (i, 0))

    out_2d = pl.pallas_call(
        kernel,
        out_shape=jax.ShapeDtypeStruct((rows, lane_w), out_dtype),
        grid_spec=pltpu.PrefetchScalarGridSpec(
            num_scalar_prefetch=0,
            grid=(num_tiles,),
            in_specs=[pl.BlockSpec(memory_space=pltpu.SMEM)]  # theta (tiny)
                     + [block_spec] * n_layers,                # one per branch
            out_specs=block_spec,
        ),
        compiler_params=pltpu.CompilerParams(
            dimension_semantics=("parallel",),     # megacore sharding (v7x)
            vmem_limit_bytes=32 * 1024 * 1024,
        ),
    )(theta, *slabs)

    flat_out = out_2d.reshape(padded)
    if padded != total:
        flat_out = flat_out[:total]
    y = flat_out.reshape(out_shape)
    return y, theta


if __name__ == "__main__":
    key = jax.random.PRNGKey(0)

    # Small shapes consistent with the module: n_layers alternative branches,
    # each producing an NCHW feature map of identical shape.
    n_layers = 3
    B, C, H, W = 2, 4, 16, 16

    keys = jax.random.split(key, n_layers + 1)
    layers_outputs = [
        jax.random.normal(keys[i], (B, C, H, W), dtype=jnp.float32)
        for i in range(n_layers)
    ]
    # Deterministic parameter init as in __init__: alpha = 1/n_layers * ones.
    alpha = jnp.full((n_layers,), 1.0 / n_layers, dtype=jnp.float32)

    y, theta = pit_supernet_combiner_forward(layers_outputs, alpha,
                                             softmax_temperature=1.0,
                                             hard_softmax=False)
    jax.block_until_ready(y)

    # Reference check (pure JAX, same math as the PyTorch forward).
    theta_ref = jax.nn.softmax(alpha, axis=0)
    y_ref = sum(theta_ref[i] * layers_outputs[i] for i in range(n_layers))
    assert y.shape == (B, C, H, W)
    assert y.dtype == layers_outputs[0].dtype
    assert jnp.allclose(theta, theta_ref, atol=1e-6, rtol=1e-6)
    assert jnp.allclose(y, y_ref, atol=1e-5, rtol=1e-5)

    # Also exercise the hard_softmax (one-hot selection) path.
    alpha_h = jnp.array([0.1, 0.7, 0.2], dtype=jnp.float32)
    y_h, theta_h = pit_supernet_combiner_forward(layers_outputs, alpha_h,
                                                 softmax_temperature=1.0,
                                                 hard_softmax=True)
    jax.block_until_ready(y_h)
    assert jnp.allclose(theta_h, jnp.array([0.0, 1.0, 0.0], dtype=jnp.float32))
    assert jnp.allclose(y_h, layers_outputs[1], atol=1e-6, rtol=1e-6)

    print("KERNEL_OK")
</pallas_src>

<mosaic_0001>
module attributes {stable_mosaic.version = 11 : i64} {
  func.func @kernel(%arg0: i32, %arg1: memref<3xf32, #tpu.memory_space<smem>>, %arg2: memref<8x256xf32, #tpu.memory_space<vmem>>, %arg3: memref<8x256xf32, #tpu.memory_space<vmem>>, %arg4: memref<8x256xf32, #tpu.memory_space<vmem>>, %arg5: memref<8x256xf32, #tpu.memory_space<vmem>>) attributes {dimension_semantics = [#tpu.dimension_semantics<parallel>], iteration_bounds = array<i64: 1>, scalar_prefetch = 0 : i64, scratch_operands = 0 : i64, tpu.core_type = #tpu.core_type<tc>, window_params = [{transform_indices = @transform_0, window_bounds = array<i64: 3>}, {transform_indices = @transform_1, window_bounds = array<i64: 8, 256>}, {transform_indices = @transform_2, window_bounds = array<i64: 8, 256>}, {transform_indices = @transform_3, window_bounds = array<i64: 8, 256>}, {transform_indices = @transform_4, window_bounds = array<i64: 8, 256>}]} {
    %c0 = arith.constant 0 : index
    %0 = memref.load %arg1[%c0] : memref<3xf32, #tpu.memory_space<smem>>
    %c0_0 = arith.constant 0 : index
    %c0_1 = arith.constant 0 : index
    %1 = vector.load %arg2[%c0_0, %c0_1] : memref<8x256xf32, #tpu.memory_space<vmem>>, vector<8x256xf32>
    %2 = vector.broadcast %0 : f32 to vector<8x256xf32>
    %3 = arith.mulf %2, %1 : vector<8x256xf32>
    %c1 = arith.constant 1 : index
    %4 = memref.load %arg1[%c1] : memref<3xf32, #tpu.memory_space<smem>>
    %c0_2 = arith.constant 0 : index
    %c0_3 = arith.constant 0 : index
    %5 = vector.load %arg3[%c0_2, %c0_3] : memref<8x256xf32, #tpu.memory_space<vmem>>, vector<8x256xf32>
    %6 = vector.broadcast %4 : f32 to vector<8x256xf32>
    %7 = arith.mulf %6, %5 : vector<8x256xf32>
    %8 = arith.addf %3, %7 : vector<8x256xf32>
    %c2 = arith.constant 2 : index
    %9 = memref.load %arg1[%c2] : memref<3xf32, #tpu.memory_space<smem>>
    %c0_4 = arith.constant 0 : index
    %c0_5 = arith.constant 0 : index
    %10 = vector.load %arg4[%c0_4, %c0_5] : memref<8x256xf32, #tpu.memory_space<vmem>>, vector<8x256xf32>
    %11 = vector.broadcast %9 : f32 to vector<8x256xf32>
    %12 = arith.mulf %11, %10 : vector<8x256xf32>
    %13 = arith.addf %8, %12 : vector<8x256xf32>
    %c0_6 = arith.constant 0 : index
    %c0_7 = arith.constant 0 : index
    %14 = vector.load %arg5[%c0_6, %c0_7] : memref<8x256xf32, #tpu.memory_space<vmem>>, vector<8x256xf32>
    tpu.vector_store %arg5[%c0_6, %c0_7], %13 {strides = array<i32>} : memref<8x256xf32, #tpu.memory_space<vmem>>, vector<8x256xf32>,
    return
  }
  func.func @transform_0(%arg0: i32) -> i32 {
    %c0_i32 = arith.constant 0 : i32
    %c0_i32_0 = arith.constant 0 : i32
    return %c0_i32 : i32
  }
  func.func @transform_1(%arg0: i32) -> (i32, i32) {
    %c0_i32 = arith.constant 0 : i32
    %c0_i32_0 = arith.constant 0 : i32
    return %arg0, %c0_i32 : i32, i32
  }
  func.func @transform_2(%arg0: i32) -> (i32, i32) {
    %c0_i32 = arith.constant 0 : i32
    %c0_i32_0 = arith.constant 0 : i32
    return %arg0, %c0_i32 : i32, i32
  }
  func.func @transform_3(%arg0: i32) -> (i32, i32) {
    %c0_i32 = arith.constant 0 : i32
    %c0_i32_0 = arith.constant 0 : i32
    return %arg0, %c0_i32 : i32, i32
  }
  func.func @transform_4(%arg0: i32) -> (i32, i32) {
    %c0_i32 = arith.constant 0 : i32
    %c0_i32_0 = arith.constant 0 : i32
    return %arg0, %c0_i32 : i32, i32
  }
}

</mosaic_0001>

<llo_original>
// kernel: pit_supernet_combiner_forward.1
$region0: #{pit_supernet_combiner_forward.1}
  #allocation0 [shape = 'u32[]', space=smem, size = 0x4, offset = 0x4, fixed_abs, tag = 'smem constant byte address 0x4 - core index']
  #allocation1 [shape = 'u32[144,128]{1,0:T(1,128)}', space=vmem, size = 0x12000, scoped, tag = 'internal scratch']
  %s0 = inlined_call_operand.vmem [shape: f32[3], index: 0, kind: input, shape index: {}]
  %s1 = inlined_call_operand.vmem [shape: f32[8,256], index: 1, kind: input, shape index: {}]
  %s2 = inlined_call_operand.vmem [shape: f32[8,256], index: 2, kind: input, shape index: {}]
  %s3 = inlined_call_operand.vmem [shape: f32[8,256], index: 3, kind: input, shape index: {}]
  %s4 = inlined_call_operand.vmem [shape: f32[8,256], index: 4, kind: output, shape index: {}]
  %s5 = sld [smem:[#allocation0]]
  $region30: #{pit_supernet_combiner_forward.1} parent=0
    _
  %s7 = ssub.s32 1, %s5
  %s8 = scalar_select 0, %s7, %s5
  $region1: #{pit_supernet_combiner_forward.1} parent=0
    #allocation2 [shape = 'u8[512]{0}', space=smem, size = 0x200, scoped, tag = 'input window, operand 0, single buffered']
    #allocation3 [shape = 's32[1]{0}', space=sflag, size = 0x4, scoped, tag = 'scoped memory for pit_supernet_combiner_forward.1']
    %9 = vsyncpa [#allocation3], 0
    // Predicated region
    $region2: #{pit_supernet_combiner_forward.1} parent=1 // pred_check
      _
    $region3: #{pit_supernet_combiner_forward.1} parent=1 // pred_check_branch
      %11 = sbr.rel (0) target = $region5
    $region4: #{pit_supernet_combiner_forward.1} parent=1 // pred_region
      %s13 = ssub.s32 16, 16
      %14 = vsyncadd [#allocation3], %s13
      %s16 = sshll.u32 %s0, 4
      %s17 = int_to_ptr.vmem [resolvable:$true] %s16
      %19 = dma.vmem_to_smem %s17, 16, [#allocation2], [#allocation3]
    $region5: #{pit_supernet_combiner_forward.1} parent=1 // pred_fallthru
      _
    // Predicated region
    $region6: #{pit_supernet_combiner_forward.1} parent=1 // pred_check
      _
    $region7: #{pit_supernet_combiner_forward.1} parent=1 // pred_check_branch
      %21 = sbr.rel (0) target = $region9
    $region8: #{pit_supernet_combiner_forward.1} parent=1 // pred_region
      _
    $region9: #{pit_supernet_combiner_forward.1} parent=1 // pred_fallthru
      _
    // Predicated region
    $region10: #{pit_supernet_combiner_forward.1} parent=1 // pred_check
      _
    $region11: #{pit_supernet_combiner_forward.1} parent=1 // pred_check_branch
      %23 = sbr.rel (0) target = $region13
    $region12: #{pit_supernet_combiner_forward.1} parent=1 // pred_region
      _
    $region13: #{pit_supernet_combiner_forward.1} parent=1 // pred_fallthru
      _
    // Predicated region
    $region14: #{pit_supernet_combiner_forward.1} parent=1 // pred_check
      _
    $region15: #{pit_supernet_combiner_forward.1} parent=1 // pred_check_branch
      %25 = sbr.rel (0) target = $region17
    $region16: #{pit_supernet_combiner_forward.1} parent=1 // pred_region
      _
    $region17: #{pit_supernet_combiner_forward.1} parent=1 // pred_fallthru
      _
    // Predicated region
    $region18: #{pit_supernet_combiner_forward.1} parent=1 // pred_check
      _
    $region19: #{pit_supernet_combiner_forward.1} parent=1 // pred_check_branch
      %27 = sbr.rel (0) target = $region21
    $region20: #{pit_supernet_combiner_forward.1} parent=1 // pred_region
      %28 = dma.done [#allocation3], 16
    $region21: #{pit_supernet_combiner_forward.1} parent=1 // pred_fallthru
      _
    %29 = sfence
    %s30 = sld [smem:[#allocation2]]
    %v31 = vld [vmem:[%s1] sm:$0xff]
    %v32 = vld [vmem:[%s1 + $0x8] sm:$0xff]
    %v33 = vstv %s30
    %v34 = vmul.f32 %v33, %v31
    %v35 = vmul.f32 %v33, %v32
    %s36 = sld [smem:[#allocation2 + $0x1]]
    %v37 = vld [vmem:[%s2] sm:$0xff]
    %v38 = vld [vmem:[%s2 + $0x8] sm:$0xff]
    %v39 = vstv %s36
    %v40 = vmul.f32 %v39, %v37
    %v41 = vmul.f32 %v39, %v38
    %v42 = vadd.f32 %v34, %v40
    %v43 = vadd.f32 %v35, %v41
    %s44 = sld [smem:[#allocation2 + $0x2]]
    %v45 = vld [vmem:[%s3] sm:$0xff]
    %v46 = vld [vmem:[%s3 + $0x8] sm:$0xff]
    %v47 = vstv %s44
    %v48 = vmul.f32 %v47, %v45
    %v49 = vmul.f32 %v47, %v46
    %v50 = vadd.f32 %v42, %v48
    %v51 = vadd.f32 %v43, %v49
    %52 = vst [vmem:[%s4] sm:$0xff] %v50
    %53 = vst [vmem:[%s4 + $0x8] sm:$0xff] %v51
    // Predicated region
    $region22: #{pit_supernet_combiner_forward.1} parent=1 // pred_check
      _
    $region23: #{pit_supernet_combiner_forward.1} parent=1 // pred_check_branch
      %55 = sbr.rel (0) target = $region25
    $region24: #{pit_supernet_combiner_forward.1} parent=1 // pred_region
      _
    $region25: #{pit_supernet_combiner_forward.1} parent=1 // pred_fallthru
      _
    // Predicated region
    $region26: #{pit_supernet_combiner_forward.1} parent=1 // pred_check
      _
    $region27: #{pit_supernet_combiner_forward.1} parent=1 // pred_check_branch
      %57 = sbr.rel (0) target = $region29
    $region28: #{pit_supernet_combiner_forward.1} parent=1 // pred_region
      _
    $region29: #{pit_supernet_combiner_forward.1} parent=1 // pred_fallthru
      _
    %58 = vsyncpa [#allocation3], 1

</llo_original>
